<compile_context>
chip_gen: v7x
topology: tpu7x:2x2x1
jax: 0.10.0
libtpu: 0.0.40
codegen_flags: <defaults>
</compile_context>

<pallas_src>
import functools

import jax
import jax.numpy as jnp
from jax import lax
from jax.experimental import pallas as pl
from jax.experimental.pallas import tpu as pltpu


def _clip_embed_kernel(patch_ref, w_ref, pos_ref, out_ref, *, bt):
    # patch_ref: (bt, N+1, K)  flattened patch pixels; row 0 per image is zeros
    # w_ref:     (K, D)        conv weight as matmul operand
    # pos_ref:   (N+1, D) f32  position table, row 0 = class_emb + pos_emb[0]
    # out_ref:   (bt, N+1, D)
    w = w_ref[...]        # hoisted out of the loop
    pos = pos_ref[...]    # hoisted out of the loop (f32)

    def body(i, carry):
        pe = jnp.dot(patch_ref[i], w, preferred_element_type=jnp.float32)
        out_ref[i] = (pe + pos).astype(out_ref.dtype)   # one aligned slab store
        return carry

    lax.fori_loop(0, bt, body, 0, unroll=True)


def clip_vision_embeddings(pixel_values, conv_weight, class_embedding,
                           position_embedding, patch_size, *,
                           batch_tile=None, compute_dtype=None,
                           vmem_budget_bytes=40 * 1024 * 1024):
    B, C, H, W = pixel_values.shape
    P = patch_size
    Hp, Wp = H // P, W // P
    N = Hp * Wp                       # num_patches
    D = conv_weight.shape[0]          # embed_dim
    K = C * P * P                     # contraction dim (full extent -> legal block)

    # im2col: stride-P, kernel-P conv == patch extraction + matmul.  Flatten
    # each patch in (C, kh, kw) order to match the OIHW conv weight reshape.
    patches = pixel_values.reshape(B, C, Hp, P, Wp, P)
    patches = patches.transpose(0, 2, 4, 1, 3, 5).reshape(B, N, K)
    # Prepend one zero row per image (the class-token row) so the kernel's
    # store is a single aligned full-slab write (no offset-1 / masked stores).
    patches = jnp.pad(patches, ((0, 0), (1, 0), (0, 0)))            # (B, N+1, K)
    w_mat = conv_weight.reshape(D, K).T                             # (K, D)

    if compute_dtype is not None:     # e.g. jnp.bfloat16 for serving
        patches = patches.astype(compute_dtype)
        w_mat = w_mat.astype(compute_dtype)

    # Full (N+1, D) position table in f32; row 0 pre-folded with the class
    # embedding so the zero patch row turns into the class token.
    pos_f32 = position_embedding.astype(jnp.float32)
    cls_row = class_embedding.astype(jnp.float32)[None, :] + pos_f32[0:1]
    pos_full = jnp.concatenate([cls_row, pos_f32[1:]], axis=0)      # (N+1, D)

    out_dtype = pixel_values.dtype
    in_esz = patches.dtype.itemsize
    out_esz = jnp.dtype(out_dtype).itemsize

    # Batch tile: largest divisor of B whose double-buffered blocks fit the
    # VMEM budget, capped so the parallel grid axis keeps >= 2 steps when
    # B >= 2 (v7x megacore needs >= 2 parallel steps to use both TCs).
    per_img_in = (N + 1) * K * in_esz
    per_img_out = (N + 1) * D * out_esz
    const_bytes = 2 * (K * D * in_esz + (N + 1) * D * 4)   # w + pos (dbl-buffered)
    if batch_tile is None:
        bt = 1
        for cand in range(1, B + 1):
            if B % cand:
                continue
            if B >= 2 and B // cand < 2:
                continue
            if 2 * cand * (per_img_in + per_img_out) + const_bytes <= vmem_budget_bytes:
                bt = cand
    else:
        bt = max(1, min(batch_tile, B))
        while B % bt:
            bt -= 1

    cost = pl.CostEstimate(
        flops=2 * B * (N + 1) * K * D,
        transcendentals=0,
        bytes_accessed=(B * (N + 1) * K * in_esz        # patches read
                        + K * D * in_esz                # weight read
                        + (N + 1) * D * 4               # position table read
                        + B * (N + 1) * D * out_esz))   # output write

    kernel = functools.partial(_clip_embed_kernel, bt=bt)
    out = pl.pallas_call(
        kernel,
        out_shape=jax.ShapeDtypeStruct((B, N + 1, D), out_dtype),
        grid=(B // bt,),
        in_specs=[
            pl.BlockSpec((bt, N + 1, K), lambda g: (g, 0, 0)),
            pl.BlockSpec((K, D), lambda g: (0, 0)),
            pl.BlockSpec((N + 1, D), lambda g: (0, 0)),
        ],
        out_specs=pl.BlockSpec((bt, N + 1, D), lambda g: (g, 0, 0)),
        compiler_params=pltpu.CompilerParams(
            dimension_semantics=("parallel",),
            vmem_limit_bytes=48 * 1024 * 1024),
        cost_estimate=cost,
    )(patches, w_mat, pos_full)
    return out


def reference(pixel_values, conv_weight, class_embedding, position_embedding,
              patch_size):
    # Pure-JAX reference mirroring the PyTorch forward exactly.
    pe = jax.lax.conv_general_dilated(
        pixel_values, conv_weight,
        window_strides=(patch_size, patch_size), padding="VALID",
        dimension_numbers=("NCHW", "OIHW", "NCHW"))
    B, D, Hp, Wp = pe.shape
    pe = pe.reshape(B, D, Hp * Wp).transpose(0, 2, 1)   # flatten(2).transpose(1,2)
    cls = jnp.broadcast_to(class_embedding, (B, 1, D))
    emb = jnp.concatenate([cls, pe], axis=1)
    return emb + position_embedding[None]               # position_ids = arange(N+1)


if __name__ == "__main__":
    # Small, module-consistent config: in_channels fixed at 3 by the module,
    # image_size=16, patch_size=8, hidden=32, batch=2.
    batch, channels, image_size, patch_size, embed_dim = 2, 3, 16, 8, 32
    num_patches = (image_size // patch_size) ** 2
    num_positions = num_patches + 1

    key = jax.random.PRNGKey(0)
    k_px, k_cls, k_w, k_pos = jax.random.split(key, 4)

    pixel_values = jax.random.normal(
        k_px, (batch, channels, image_size, image_size), dtype=jnp.float32)
    class_embedding = jax.random.normal(k_cls, (embed_dim,), dtype=jnp.float32)
    conv_weight = jax.random.normal(
        k_w, (embed_dim, channels, patch_size, patch_size), dtype=jnp.float32) * 0.02
    position_embedding = jax.random.normal(
        k_pos, (num_positions, embed_dim), dtype=jnp.float32) * 0.02

    ref = reference(pixel_values, conv_weight, class_embedding,
                    position_embedding, patch_size)

    # f32 path (default tiling: bt=1, grid=(2,) -> two parallel steps).
    out = clip_vision_embeddings(pixel_values, conv_weight, class_embedding,
                                 position_embedding, patch_size)
    out = jax.block_until_ready(out)
    assert out.shape == (batch, num_positions, embed_dim)
    assert jnp.allclose(out, ref, atol=1e-4, rtol=1e-4)

    # f32 path with bt=2 (exercises the multi-image unrolled loop in one step).
    out_bt2 = clip_vision_embeddings(pixel_values, conv_weight, class_embedding,
                                     position_embedding, patch_size,
                                     batch_tile=2)
    out_bt2 = jax.block_until_ready(out_bt2)
    assert jnp.allclose(out_bt2, ref, atol=1e-4, rtol=1e-4)

    # bf16 operand path (halved DMA bytes; f32 accumulate) — looser tolerance.
    out_bf16 = clip_vision_embeddings(pixel_values, conv_weight, class_embedding,
                                      position_embedding, patch_size,
                                      compute_dtype=jnp.bfloat16)
    out_bf16 = jax.block_until_ready(out_bf16)
    assert jnp.allclose(out_bf16, ref, atol=3e-2, rtol=3e-2)

    print("KERNEL_OK")
</pallas_src>

<mosaic_0001>
module attributes {stable_mosaic.version = 11 : i64} {
  func.func @_clip_embed_kernel(%arg0: i32, %arg1: memref<1x5x192xf32, #tpu.memory_space<vmem>>, %arg2: memref<192x32xf32, #tpu.memory_space<vmem>>, %arg3: memref<5x32xf32, #tpu.memory_space<vmem>>, %arg4: memref<1x5x32xf32, #tpu.memory_space<vmem>>) attributes {dimension_semantics = [#tpu.dimension_semantics<parallel>], iteration_bounds = array<i64: 2>, scalar_prefetch = 0 : i64, scratch_operands = 0 : i64, tpu.core_type = #tpu.core_type<tc>, window_params = [{transform_indices = @transform_0, window_bounds = array<i64: 1, 5, 192>}, {pipeline_mode = #tpu.pipeline_mode<synchronous>, transform_indices = @transform_1, window_bounds = array<i64: 192, 32>}, {pipeline_mode = #tpu.pipeline_mode<synchronous>, transform_indices = @transform_2, window_bounds = array<i64: 5, 32>}, {transform_indices = @transform_3, window_bounds = array<i64: 1, 5, 32>}]} {
    %c0 = arith.constant 0 : index
    %c0_0 = arith.constant 0 : index
    %0 = vector.load %arg2[%c0, %c0_0] : memref<192x32xf32, #tpu.memory_space<vmem>>, vector<192x32xf32>
    %c0_1 = arith.constant 0 : index
    %c0_2 = arith.constant 0 : index
    %1 = vector.load %arg3[%c0_1, %c0_2] : memref<5x32xf32, #tpu.memory_space<vmem>>, vector<5x32xf32>
    %c0_i32 = arith.constant 0 : i32
    %2 = arith.index_cast %c0_i32 : i32 to index
    %c0_3 = arith.constant 0 : index
    %c0_4 = arith.constant 0 : index
    %3 = vector.load %arg1[%2, %c0_3, %c0_4] : memref<1x5x192xf32, #tpu.memory_space<vmem>>, vector<1x5x192xf32>
    %4 = vector.shape_cast %3 : vector<1x5x192xf32> to vector<5x192xf32>
    %cst = arith.constant dense<0.000000e+00> : vector<5x32xf32>
    %5 = tpu.matmul %4, %0, %cst {dimension_numbers = #tpu.dot_dimension_numbers<[1], [0], [0], [1], [0, 0, 1, 1], [], []>} : vector<5x192xf32>, vector<192x32xf32>, vector<5x32xf32> -> vector<5x32xf32>
    %6 = arith.addf %5, %1 : vector<5x32xf32>
    %7 = arith.index_cast %c0_i32 : i32 to index
    %c0_5 = arith.constant 0 : index
    %c0_6 = arith.constant 0 : index
    %8 = vector.load %arg4[%7, %c0_5, %c0_6] : memref<1x5x32xf32, #tpu.memory_space<vmem>>, vector<1x5x32xf32>
    %9 = vector.shape_cast %8 : vector<1x5x32xf32> to vector<5x32xf32>
    %10 = vector.shape_cast %6 : vector<5x32xf32> to vector<1x5x32xf32>
    tpu.vector_store %arg4[%7, %c0_5, %c0_6], %10 {strides = array<i32>} : memref<1x5x32xf32, #tpu.memory_space<vmem>>, vector<1x5x32xf32>,
    %c1_i32 = arith.constant 1 : i32
    return
  }
  func.func @transform_0(%arg0: i32) -> (i32, i32, i32) {
    %c0_i32 = arith.constant 0 : i32
    %c0_i32_0 = arith.constant 0 : i32
    %c0_i32_1 = arith.constant 0 : i32
    return %arg0, %c0_i32, %c0_i32_0 : i32, i32, i32
  }
  func.func @transform_1(%arg0: i32) -> (i32, i32) {
    %c0_i32 = arith.constant 0 : i32
    %c0_i32_0 = arith.constant 0 : i32
    %c0_i32_1 = arith.constant 0 : i32
    return %c0_i32, %c0_i32_0 : i32, i32
  }
  func.func @transform_2(%arg0: i32) -> (i32, i32) {
    %c0_i32 = arith.constant 0 : i32
    %c0_i32_0 = arith.constant 0 : i32
    %c0_i32_1 = arith.constant 0 : i32
    return %c0_i32, %c0_i32_0 : i32, i32
  }
  func.func @transform_3(%arg0: i32) -> (i32, i32, i32) {
    %c0_i32 = arith.constant 0 : i32
    %c0_i32_0 = arith.constant 0 : i32
    %c0_i32_1 = arith.constant 0 : i32
    return %arg0, %c0_i32, %c0_i32_0 : i32, i32, i32
  }
}

</mosaic_0001>

<llo_original>
// kernel: tpu_custom_call.1
$region0: #{tpu_custom_call.1}
  #allocation0 [shape = 'u32[]', space=smem, size = 0x4, offset = 0x4, fixed_abs, tag = 'smem constant byte address 0x4 - core index']
  #allocation1 [shape = 'u32[144,128]{1,0:T(1,128)}', space=vmem, size = 0x12000, scoped, tag = 'internal scratch']
  %s0 = inlined_call_operand.vmem [shape: f32[2,5,192], index: 0, kind: input, shape index: {}]
  %s1 = inlined_call_operand.vmem [shape: f32[192,32], index: 1, kind: input, shape index: {}]
  %s2 = inlined_call_operand.vmem [shape: f32[5,32], index: 2, kind: input, shape index: {}]
  %s3 = inlined_call_operand.vmem [shape: f32[2,5,32], index: 3, kind: output, shape index: {}]
  %s4 = sld [smem:[#allocation0]]
  $region45: #{tpu_custom_call.1} parent=0
    _
  %s6 = ssub.s32 1, %s4
  %s7 = scalar_select 0, %s6, %s4
  loop: start=0, step=1, limit=4
  $region2: #{tpu_custom_call.1} parent=0 // loop_pre_header
    _
  $region3: #{tpu_custom_call.1} parent=0 // loop_header
    %s9 = sphi 0, %s13
    %p10 = scmp.ge.s32.totalorder %s9, 4
    %s19 = sphi 0, %s21
    %s22 = sphi 0, %s19
    %s23 = sphi 0, %s22
    %s39 = sphi 0, %s23
    %s43 = sphi 0, %s43
    %s45 = sphi 0, %s43
    %s46 = sphi 0, %s45
    %s60 = sphi 0, %s46
    %s64 = sphi 0, %s64
    %s66 = sphi 0, %s64
    %s67 = sphi 0, %s66
    %s81 = sphi 0, %s67
    %s87 = sphi 0, %s89
    %s90 = sphi 0, %s87
    %s91 = sphi 0, %s90
    %s107 = sphi 0, %s91
  $region4: #{tpu_custom_call.1} parent=0 // loop_header_branch
    %12 = sbr.rel (%p10) target = $region8
  $region5: #{tpu_custom_call.1} parent=0 // loop_body
    %s14 = ssub.s32 %s9, 1
    %s15 = ssub.s32 %s9, 2
    %s16 = sadd.s32 %s9, 1
    %s17 = ssub.s32 %s9, %s16
    %p18 = scmp.eq.s32.totalorder %s17, 0
    %s20 = sadd.s32 %s19, 1
    %s21 = scalar_select %p18, %s19, %s20
    %p24 = pneg %p18
    %p25 = scmp.eq.s32.totalorder %s9, 1
    %p26 = por %p24, %p25
    %p27 = scmp.ne.s32.totalorder %s19, %s22
    %p28 = scmp.eq.s32.totalorder %s9, 0
    %p29 = por %p27, %p28
    %p30 = scmp.ne.s32.totalorder %s19, %s22
    %p31 = scmp.eq.s32.totalorder %s14, 1
    %p32 = por %p30, %p31
    %p33 = scmp.ne.s32.totalorder %s22, %s23
    %p34 = scmp.eq.s32.totalorder %s14, 0
    %p35 = por %p33, %p34
    %p36 = scmp.ne.s32.totalorder %s22, %s23
    %p37 = scmp.eq.s32.totalorder %s15, 1
    %p38 = por %p36, %p37
    %p40 = scmp.ne.s32.totalorder %s23, %s39
    %p41 = scmp.eq.s32.totalorder %s15, 0
    %p42 = por %p40, %p41
    %s44 = sadd.s32 %s43, 1
    %p47 = scmp.eq.s32.totalorder %s9, 1
    %p48 = scmp.ne.s32.totalorder %s43, %s45
    %p49 = scmp.eq.s32.totalorder %s9, 0
    %p50 = por %p48, %p49
    %p51 = scmp.ne.s32.totalorder %s43, %s45
    %p52 = scmp.eq.s32.totalorder %s14, 1
    %p53 = por %p51, %p52
    %p54 = scmp.ne.s32.totalorder %s45, %s46
    %p55 = scmp.eq.s32.totalorder %s14, 0
    %p56 = por %p54, %p55
    %p57 = scmp.ne.s32.totalorder %s45, %s46
    %p58 = scmp.eq.s32.totalorder %s15, 1
    %p59 = por %p57, %p58
    %p61 = scmp.ne.s32.totalorder %s46, %s60
    %p62 = scmp.eq.s32.totalorder %s15, 0
    %p63 = por %p61, %p62
    %s65 = sadd.s32 %s64, 1
    %p68 = scmp.eq.s32.totalorder %s9, 1
    %p69 = scmp.ne.s32.totalorder %s64, %s66
    %p70 = scmp.eq.s32.totalorder %s9, 0
    %p71 = por %p69, %p70
    %p72 = scmp.ne.s32.totalorder %s64, %s66
    %p73 = scmp.eq.s32.totalorder %s14, 1
    %p74 = por %p72, %p73
    %p75 = scmp.ne.s32.totalorder %s66, %s67
    %p76 = scmp.eq.s32.totalorder %s14, 0
    %p77 = por %p75, %p76
    %p78 = scmp.ne.s32.totalorder %s66, %s67
    %p79 = scmp.eq.s32.totalorder %s15, 1
    %p80 = por %p78, %p79
    %p82 = scmp.ne.s32.totalorder %s67, %s81
    %p83 = scmp.eq.s32.totalorder %s15, 0
    %p84 = por %p82, %p83
    %s85 = ssub.s32 %s9, %s16
    %p86 = scmp.eq.s32.totalorder %s85, 0
    %s88 = sadd.s32 %s87, 1
    %s89 = scalar_select %p86, %s87, %s88
    %p92 = pneg %p86
    %p93 = scmp.eq.s32.totalorder %s9, 1
    %p94 = por %p92, %p93
    %p95 = scmp.ne.s32.totalorder %s87, %s90
    %p96 = scmp.eq.s32.totalorder %s9, 0
    %p97 = por %p95, %p96
    %p98 = scmp.ne.s32.totalorder %s87, %s90
    %p99 = scmp.eq.s32.totalorder %s14, 1
    %p100 = por %p98, %p99
    %p101 = scmp.ne.s32.totalorder %s90, %s91
    %p102 = scmp.eq.s32.totalorder %s14, 0
    %p103 = por %p101, %p102
    %p104 = scmp.ne.s32.totalorder %s90, %s91
    %p105 = scmp.eq.s32.totalorder %s15, 1
    %p106 = por %p104, %p105
    %p108 = scmp.ne.s32.totalorder %s91, %s107
    %p109 = scmp.eq.s32.totalorder %s15, 0
    %p110 = por %p108, %p109
    %p111 = scmp.le.s32.totalorder 1, %s9
    %p112 = scmp.lt.s32.totalorder %s9, 3
    %p113 = pnand %p111, %p112
    %p114 = pneg %p113
    // Predicated region
    $region9: #{tpu_custom_call.1} parent=5 // pred_check
      _
    $region10: #{tpu_custom_call.1} parent=5 // pred_check_branch
      %116 = sbr.rel (%p113) target = $region12
    $region11: #{tpu_custom_call.1} parent=5 // pred_region
      %s117 = ssub.s32 %s9, 1
      // Predicated region
      $region13: #{tpu_custom_call.1} parent=11 // pred_check
        %p118 = pneg %p56
      $region14: #{tpu_custom_call.1} parent=11 // pred_check_branch
        %120 = sbr.rel (%p118) target = $region16
      $region15: #{tpu_custom_call.1} parent=11 // pred_region
        _
      $region16: #{tpu_custom_call.1} parent=11 // pred_fallthru
        _
      // Predicated region
      $region17: #{tpu_custom_call.1} parent=11 // pred_check
        %p121 = pneg %p77
      $region18: #{tpu_custom_call.1} parent=11 // pred_check_branch
        %123 = sbr.rel (%p121) target = $region20
      $region19: #{tpu_custom_call.1} parent=11 // pred_region
        _
      $region20: #{tpu_custom_call.1} parent=11 // pred_fallthru
        _
    $region12: #{tpu_custom_call.1} parent=5 // pred_fallthru
      _
    %p124 = scmp.lt.s32.totalorder %s9, 2
    // Predicated region
    $region21: #{tpu_custom_call.1} parent=5 // pred_check
      %p125 = pneg %p124
    $region22: #{tpu_custom_call.1} parent=5 // pred_check_branch
      %127 = sbr.rel (%p125) target = $region24
    $region23: #{tpu_custom_call.1} parent=5 // pred_region
      // Predicated region
      $region25: #{tpu_custom_call.1} parent=23 // pred_check
        %p128 = pneg %p29
      $region26: #{tpu_custom_call.1} parent=23 // pred_check_branch
        %130 = sbr.rel (%p128) target = $region28
      $region27: #{tpu_custom_call.1} parent=23 // pred_region
        %p131 = scmp.lt.s32.totalorder %s9, 1
        %s132 = scalar_select %p131, %s9, 1
        %s133 = smul.addr %s132, 2
        %s134 = smul.addr %s133, 8
        %s135 = scalar_lea.vmem %s0, %s134
      $region28: #{tpu_custom_call.1} parent=23 // pred_fallthru
        _
    $region24: #{tpu_custom_call.1} parent=5 // pred_fallthru
      _
    %p136 = scmp.le.s32.totalorder 1, %s9
    %p137 = scmp.lt.s32.totalorder %s9, 3
    %p138 = pnand %p136, %p137
    %p139 = pneg %p138
    // Predicated region
    $region29: #{tpu_custom_call.1} parent=5 // pred_check
      _
    $region30: #{tpu_custom_call.1} parent=5 // pred_check_branch
      %141 = sbr.rel (%p138) target = $region32
    $region31: #{tpu_custom_call.1} parent=5 // pred_region
      %s142 = ssub.s32 %s9, 1
      %p143 = scmp.lt.s32.totalorder %s14, 1
      %s144 = scalar_select %p143, %s14, 1
      %s145 = smul.addr %s144, 2
      %s146 = smul.addr %s145, 8
      %s147 = scalar_lea.vmem %s0, %s146
      %p148 = pneg %p35
      %p149 = pneg %p32
      %p150 = pneg %p56
      %p151 = pneg %p53
      %p152 = pneg %p77
      %p153 = pneg %p74
      %p154 = pneg %p103
      %p155 = pneg %p100
      %p156 = scmp.lt.s32.totalorder %s14, 1
      %s157 = scalar_select %p156, %s14, 1
      %s158 = smul.addr %s157, 8
      %s159 = scalar_lea.vmem %s3, %s158
      %p160 = scmp.lt.s32.totalorder %s14, 1
      %s161 = scalar_select %p160, %s14, 1
      %s162 = smul.addr %s161, 2
      %s163 = smul.addr %s162, 8
      %s164 = scalar_lea.vmem %s0, %s163
      %p165 = scmp.lt.s32.totalorder %s14, 1
      %s166 = scalar_select %p165, %s14, 1
      %s167 = smul.addr %s166, 8
      %s168 = scalar_lea.vmem %s3, %s167
      %v169 = vld [vmem:[%s1] sm:$0xff]
      %v170 = vld [vmem:[%s1 + $0x8] sm:$0xff]
      %v171 = vld [vmem:[%s1 + $0x10] sm:$0xff]
      %v172 = vld [vmem:[%s1 + $0x18] sm:$0xff]
      %v173 = vld [vmem:[%s1 + $0x20] sm:$0xff]
      %v174 = vld [vmem:[%s1 + $0x28] sm:$0xff]
      %v175 = vld [vmem:[%s1 + $0x30] sm:$0xff]
      %v176 = vld [vmem:[%s1 + $0x38] sm:$0xff]
      %v177 = vld [vmem:[%s1 + $0x40] sm:$0xff]
      %v178 = vld [vmem:[%s1 + $0x48] sm:$0xff]
      %v179 = vld [vmem:[%s1 + $0x50] sm:$0xff]
      %v180 = vld [vmem:[%s1 + $0x58] sm:$0xff]
      %v181 = vld [vmem:[%s1 + $0x60] sm:$0xff]
      %v182 = vld [vmem:[%s1 + $0x68] sm:$0xff]
      %v183 = vld [vmem:[%s1 + $0x70] sm:$0xff]
      %v184 = vld [vmem:[%s1 + $0x78] sm:$0xff]
      %v185 = vld [vmem:[%s1 + $0x80] sm:$0xff]
      %v186 = vld [vmem:[%s1 + $0x88] sm:$0xff]
      %v187 = vld [vmem:[%s1 + $0x90] sm:$0xff]
      %v188 = vld [vmem:[%s1 + $0x98] sm:$0xff]
      %v189 = vld [vmem:[%s1 + $0xa0] sm:$0xff]
      %v190 = vld [vmem:[%s1 + $0xa8] sm:$0xff]
      %v191 = vld [vmem:[%s1 + $0xb0] sm:$0xff]
      %v192 = vld [vmem:[%s1 + $0xb8] sm:$0xff]
      %v193 = vld [vmem:[%s2] sm:$0x1f]
      %v194 = vld [vmem:[%s164] sm:$0x1f]
      %v195 = vld [vmem:[%s164 + $0x8] sm:$0x1f]
      %vm196 = vcmask 523264
      %v198 = vsel %vm196, %v195, 0
      %200 = vmatprep.subr.mxu0 0.0
      %201 = vmatpush1.msra.mxu0 %v169
      %202 = vmatprep.subr.mxu0 0.0
      %203 = vmatpush1.msra.mxu0 %v170
      %204 = vmatprep.subr.mxu0 0.0
      %205 = vmatpush1.msra.mxu0 %v171
      %206 = vmatprep.subr.mxu0 0.0
      %207 = vmatpush1.msra.mxu0 %v172
      %208 = vmatprep.subr.mxu0 0.0
      %209 = vmatpush1.msra.mxu0 %v173
      %210 = vmatprep.subr.mxu0 0.0
      %211 = vmatpush1.msra.mxu0 %v174
      %212 = vmatprep.subr.mxu0 0.0
      %213 = vmatpush1.msra.mxu0 %v175
      %214 = vmatprep.subr.mxu0 0.0
      %215 = vmatpush1.msra.mxu0 %v176
      %216 = vmatprep.subr.mxu0 0.0
      %217 = vmatpush1.msra.mxu0 %v177
      %218 = vmatprep.subr.mxu0 0.0
      %219 = vmatpush1.msra.mxu0 %v178
      %220 = vmatprep.subr.mxu0 0.0
      %221 = vmatpush1.msra.mxu0 %v179
      %222 = vmatprep.subr.mxu0 0.0
      %223 = vmatpush1.msra.mxu0 %v180
      %224 = vmatprep.subr.mxu0 0.0
      %225 = vmatpush1.msra.mxu0 %v181
      %226 = vmatprep.subr.mxu0 0.0
      %227 = vmatpush1.msra.mxu0 %v182
      %228 = vmatprep.subr.mxu0 0.0
      %229 = vmatpush1.msra.mxu0 %v183
      %230 = vmatprep.subr.mxu0 0.0
      %231 = vmatpush1.msra.mxu0 %v184
      %232 = vmatprep.subr.mxu0 0.0
      %233 = vmatpush1.msra.mxu0 %v185
      %234 = vmatprep.subr.mxu0 0.0
      %235 = vmatpush1.msra.mxu0 %v186
      %236 = vmatprep.subr.mxu0 0.0
      %237 = vmatpush1.msra.mxu0 %v187
      %238 = vmatprep.subr.mxu0 0.0
      %239 = vmatpush1.msra.mxu0 %v188
      %240 = vmatprep.subr.mxu0 0.0
      %241 = vmatpush1.msra.mxu0 %v189
      %242 = vmatprep.subr.mxu0 0.0
      %243 = vmatpush1.msra.mxu0 %v190
      %244 = vmatprep.subr.mxu0 0.0
      %245 = vmatpush1.msra.mxu0 %v191
      %246 = vmatprep.subr.mxu0 0.0
      %247 = vmatpush1.msra.mxu0 %v192
      %248 = vmatprep.subr.mxu0 0.0
      %249 = vmatpush1.msra.mxu0 0.0
      %250 = vmatprep.subr.mxu0 0.0
      %251 = vmatpush1.msra.mxu0 0.0
      %252 = vmatprep.subr.mxu0 0.0
      %253 = vmatpush1.msra.mxu0 0.0
      %254 = vmatprep.subr.mxu0 0.0
      %255 = vmatpush1.msra.mxu0 0.0
      %256 = vmatprep.subr.mxu0 0.0
      %257 = vmatpush1.msra.mxu0 0.0
      %258 = vmatprep.subr.mxu0 0.0
      %259 = vmatpush1.msra.mxu0 0.0
      %260 = vmatprep.subr.mxu0 0.0
      %261 = vmatpush1.msra.mxu0 0.0
      %262 = vmatprep.subr.mxu0 0.0
      %263 = vmatpush1.msra.mxu0 0.0
      %264 = vmatprep.mubr.f32.mxu0 %v198
      %265 = vmatmul.mubr.f32.gmra.mrb[0].mxu0 %v194
      %v266 = vpop.f32.mrb[0].mxu0
      %v267 = vadd.f32 %v193, %v266
      %v268 = vpop.f32.mrb[0].mxu0
      %269 = vdwg.mxu0
      %vm270 = vcmask 258048
      %271 = vst.msk [vmem:[%s168] sm:$0x1f] %vm270, %v267
      %p272 = scmp.lt.s32.totalorder %s14, 1
      %s273 = scalar_select %p272, %s14, 1
      %s274 = smul.addr %s273, 8
      %s275 = scalar_lea.vmem %s3, %s274
      // Predicated region
      $region33: #{tpu_custom_call.1} parent=31 // pred_check
        %p276 = pneg %p100
      $region34: #{tpu_custom_call.1} parent=31 // pred_check_branch
        %278 = sbr.rel (%p276) target = $region36
      $region35: #{tpu_custom_call.1} parent=31 // pred_region
        _
      $region36: #{tpu_custom_call.1} parent=31 // pred_fallthru
        _
    $region32: #{tpu_custom_call.1} parent=5 // pred_fallthru
      _
    %p279 = scmp.le.s32.totalorder 2, %s9
    // Predicated region
    $region37: #{tpu_custom_call.1} parent=5 // pred_check
      %p280 = pneg %p279
    $region38: #{tpu_custom_call.1} parent=5 // pred_check_branch
      %282 = sbr.rel (%p280) target = $region40
    $region39: #{tpu_custom_call.1} parent=5 // pred_region
      %s283 = ssub.s32 %s9, 2
      // Predicated region
      $region41: #{tpu_custom_call.1} parent=39 // pred_check
        %p284 = pneg %p106
      $region42: #{tpu_custom_call.1} parent=39 // pred_check_branch
        %286 = sbr.rel (%p284) target = $region44
      $region43: #{tpu_custom_call.1} parent=39 // pred_region
        %p287 = scmp.lt.s32.totalorder %s15, 1
        %s288 = scalar_select %p287, %s15, 1
        %s289 = smul.addr %s288, 8
        %s290 = scalar_lea.vmem %s3, %s289
      $region44: #{tpu_custom_call.1} parent=39 // pred_fallthru
        _
    $region40: #{tpu_custom_call.1} parent=5 // pred_fallthru
      _
  $region6: #{tpu_custom_call.1} parent=0 // loop_footer
    %s13 = sadd.s32 1, %s9
  $region7: #{tpu_custom_call.1} parent=0 // loop_footer_branch
    %8 = sbr.rel target = $region3
  $region8: #{tpu_custom_call.1} parent=0 // loop_exit
    _

</llo_original>
